<compile_context>
chip_gen: v7x
topology: tpu7x:2x2x1
jax: 0.10.0
libtpu: 0.0.40
codegen_flags: <defaults>
</compile_context>

<pallas_src>
import jax
import jax.numpy as jnp
from jax.experimental import pallas as pl
from jax.experimental.pallas import tpu as pltpu

N_INPUT = 64
N_HIDDEN = 32
N_LAYERS = 8
N_OUTPUT = 1
BATCH = 8
BN_EPS = 1e-5
N_HIDDEN_LINEARS = N_LAYERS - 1          # 7 (32x32) linears after the first
N_BN = N_LAYERS                          # 8 batch-norm layers

# Packed weight-slab layout (rows x 32, bf16). Section starts are multiples of
# 16 so slices respect bf16 sublane packing.
WH_START = N_INPUT                                   # rows [0, 64)   : w0
WF_ROW = WH_START + N_HIDDEN_LINEARS * N_HIDDEN      # rows [64, 288) : wh, row 288: wf^T
W_ROWS = ((WF_ROW + 1 + 15) // 16) * 16              # 304 rows (padded)

# Packed BN/bias slab layout (rows x 32, f32).
BN_ROWS = 2 * N_BN + 1                               # gamma[0:8], beta[8:16], bf row 16


def mlp_kernel(x_ref, w_ref, bn_ref, out_ref):
    """Whole forward pass fused in one invocation; everything lives in VMEM."""

    def bn_relu(h, idx):
        # Training-mode BatchNorm1d with biased batch statistics.
        # Variance via E[h^2] - mean^2: the two reductions are independent, so
        # the XLU chain is half the length of the two-pass form.
        mean = jnp.mean(h, axis=0, keepdims=True)
        mean_sq = jnp.mean(h * h, axis=0, keepdims=True)
        var = jnp.maximum(mean_sq - mean * mean, 0.0)
        gamma = bn_ref[idx:idx + 1, :]
        beta = bn_ref[N_BN + idx:N_BN + idx + 1, :]
        # Fold the affine: y = h * scale + shift (2 wide VPU ops instead of 4).
        scale = gamma * jax.lax.rsqrt(var + BN_EPS)
        shift = beta - mean * scale
        return jnp.maximum(h * scale + shift, 0.0)

    # bf16 MXU inputs, f32 accumulation. Linear biases feeding a BatchNorm are
    # dropped from the kernel: they cancel exactly in (h - batch_mean).
    h = jnp.dot(x_ref[...].astype(jnp.bfloat16), w_ref[0:WH_START, :],
                preferred_element_type=jnp.float32)
    h = bn_relu(h, 0)

    for i in range(N_HIDDEN_LINEARS):
        r = WH_START + i * N_HIDDEN
        h = jnp.dot(h.astype(jnp.bfloat16), w_ref[r:r + N_HIDDEN, :],
                    preferred_element_type=jnp.float32)
        h = bn_relu(h, i + 1)

    # Final Linear(32 -> 1): weight stored as a transposed row; computed as a
    # lane multiply + cross-lane reduce (an MXU call would waste 127/128 cols).
    wf_row = w_ref[WF_ROW:WF_ROW + 1, :].astype(jnp.float32)   # (1, 32)
    bf = bn_ref[2 * N_BN:2 * N_BN + 1, 0:1]                    # (1, 1)
    # NOTE: last-dim-1 output lowers to a masked store; kept for the module's
    # (B, 1) output contract.
    out_ref[...] = jnp.sum(h * wf_row, axis=1, keepdims=True) + bf


@jax.jit
def mlp_forward(x, w_packed, bn_packed):
    vmem = pl.BlockSpec(memory_space=pltpu.MemorySpace.VMEM)
    flops = 2 * x.shape[0] * (N_INPUT * N_HIDDEN
                              + N_HIDDEN_LINEARS * N_HIDDEN * N_HIDDEN
                              + N_HIDDEN * N_OUTPUT)
    bytes_accessed = (x.size * x.dtype.itemsize
                      + w_packed.size * w_packed.dtype.itemsize
                      + bn_packed.size * bn_packed.dtype.itemsize
                      + x.shape[0] * N_OUTPUT * 4)
    return pl.pallas_call(
        mlp_kernel,
        out_shape=jax.ShapeDtypeStruct((x.shape[0], N_OUTPUT), jnp.float32),
        in_specs=[vmem, vmem, vmem],
        out_specs=vmem,
        cost_estimate=pl.CostEstimate(flops=flops,
                                      transcendentals=N_BN * N_HIDDEN,
                                      bytes_accessed=bytes_accessed),
    )(x, w_packed, bn_packed)


def init_params(key):
    """Deterministic init mimicking PyTorch Linear default U(-1/sqrt(fan_in), +)."""
    ks = jax.random.split(key, 8)

    def lin(k, fan_in, fan_out):
        bound = 1.0 / jnp.sqrt(jnp.float32(fan_in))
        kw, kb = jax.random.split(k)
        w = jax.random.uniform(kw, (fan_in, fan_out), jnp.float32, -bound, bound)
        b = jax.random.uniform(kb, (1, fan_out), jnp.float32, -bound, bound)
        return w, b

    w0, b0 = lin(ks[0], N_INPUT, N_HIDDEN)

    wh_list, bh_list = [], []
    for i in range(N_HIDDEN_LINEARS):
        w, b = lin(jax.random.fold_in(ks[1], i), N_HIDDEN, N_HIDDEN)
        wh_list.append(w)
        bh_list.append(b[0])
    wh = jnp.stack(wh_list)          # (7, 32, 32)
    bh = jnp.stack(bh_list)          # (7, 32)

    wf, bf = lin(ks[2], N_HIDDEN, N_OUTPUT)

    # PyTorch BatchNorm1d default affine params: gamma=1, beta=0
    gamma = jnp.ones((N_BN, N_HIDDEN), jnp.float32)
    beta = jnp.zeros((N_BN, N_HIDDEN), jnp.float32)

    return (w0, b0, wh, bh, wf, bf, gamma, beta)


def pack_params(params):
    """Pre-pack parameters into two contiguous buffers (done once, off the hot path).

    b0/bh are intentionally NOT packed: under training-mode BN they cancel
    exactly in (h - batch_mean).
    """
    (w0, b0, wh, bh, wf, bf, gamma, beta) = params

    w_buf = jnp.zeros((W_ROWS, N_HIDDEN), jnp.float32)
    w_buf = w_buf.at[0:WH_START].set(w0)
    w_buf = w_buf.at[WH_START:WF_ROW].set(
        wh.reshape(N_HIDDEN_LINEARS * N_HIDDEN, N_HIDDEN))
    w_buf = w_buf.at[WF_ROW].set(wf[:, 0])           # final weight, transposed row

    bn_buf = jnp.zeros((BN_ROWS, N_HIDDEN), jnp.float32)
    bn_buf = bn_buf.at[0:N_BN].set(gamma)
    bn_buf = bn_buf.at[N_BN:2 * N_BN].set(beta)
    bn_buf = bn_buf.at[2 * N_BN].set(jnp.full((N_HIDDEN,), bf[0, 0]))

    return w_buf.astype(jnp.bfloat16), bn_buf


def mlp_reference_f32(x, params):
    """PyTorch-faithful pure-f32 reference (includes all biases)."""
    (w0, b0, wh, bh, wf, bf, gamma, beta) = params

    def bn_relu(h, idx):
        mean = jnp.mean(h, axis=0, keepdims=True)
        var = jnp.mean((h - mean) ** 2, axis=0, keepdims=True)
        y = (h - mean) / jnp.sqrt(var + BN_EPS) * gamma[idx] + beta[idx]
        return jnp.maximum(y, 0.0)

    h = bn_relu(x @ w0 + b0, 0)
    for i in range(N_HIDDEN_LINEARS):
        h = bn_relu(h @ wh[i] + bh[i], i + 1)
    return h @ wf + bf


def mlp_reference_bf16(x, params):
    """Reference mirroring the kernel numerics: bf16 matmul inputs, f32 accum,
    PyTorch-faithful BN (with biases — they cancel under batch norm)."""
    (w0, b0, wh, bh, wf, bf, gamma, beta) = params

    def dot(a, w):
        return jnp.dot(a.astype(jnp.bfloat16), w.astype(jnp.bfloat16),
                       preferred_element_type=jnp.float32)

    def bn_relu(h, idx):
        mean = jnp.mean(h, axis=0, keepdims=True)
        var = jnp.mean((h - mean) ** 2, axis=0, keepdims=True)
        y = (h - mean) / jnp.sqrt(var + BN_EPS) * gamma[idx] + beta[idx]
        return jnp.maximum(y, 0.0)

    h = bn_relu(dot(x, w0) + b0, 0)
    for i in range(N_HIDDEN_LINEARS):
        h = bn_relu(dot(h, wh[i]) + bh[i], i + 1)
    return dot(h, wf) + bf


if __name__ == "__main__":
    key = jax.random.PRNGKey(0)
    kx, kp = jax.random.split(key)

    x = jax.random.normal(kx, (BATCH, N_INPUT), jnp.float32)
    params = init_params(kp)
    w_packed, bn_packed = pack_params(params)

    out = mlp_forward(x, w_packed, bn_packed)
    jax.block_until_ready(out)
    assert out.shape == (BATCH, N_OUTPUT)

    # Primary check: against a reference that mirrors the kernel's bf16-matmul
    # numerics (tight tolerance).
    ref_bf16 = mlp_reference_bf16(x, params)
    assert jnp.allclose(out, ref_bf16, atol=1e-2, rtol=1e-2), \
        "mismatch vs bf16-matmul reference"

    # Sanity check: against the full-precision PyTorch-faithful reference
    # (loose tolerance, accounts for bf16 weight/activation rounding).
    ref_f32 = mlp_reference_f32(x, params)
    assert jnp.allclose(out, ref_f32, atol=1e-1, rtol=1e-1), \
        "mismatch vs f32 reference"

    print("KERNEL_OK")
</pallas_src>

<mosaic_0001>
module attributes {stable_mosaic.version = 11 : i64} {
  func.func @mlp_kernel(%arg0: memref<8x64xf32, #tpu.memory_space<vmem>>, %arg1: memref<304x32xbf16, #tpu.memory_space<vmem>>, %arg2: memref<17x32xf32, #tpu.memory_space<vmem>>, %arg3: memref<8x1xf32, #tpu.memory_space<vmem>>) attributes {dimension_semantics = [], scalar_prefetch = 0 : i64, scratch_operands = 0 : i64, tpu.core_type = #tpu.core_type<tc>} {
    %c0 = arith.constant 0 : index
    %c0_0 = arith.constant 0 : index
    %0 = vector.load %arg0[%c0, %c0_0] : memref<8x64xf32, #tpu.memory_space<vmem>>, vector<8x64xf32>
    %1 = arith.truncf %0 : vector<8x64xf32> to vector<8x64xbf16>
    %c0_1 = arith.constant 0 : index
    %c0_2 = arith.constant 0 : index
    %2 = vector.load %arg1[%c0_1, %c0_2] : memref<304x32xbf16, #tpu.memory_space<vmem>>, vector<64x32xbf16>
    %cst = arith.constant dense<0.000000e+00> : vector<8x32xf32>
    %3 = tpu.matmul %1, %2, %cst {dimension_numbers = #tpu.dot_dimension_numbers<[1], [0], [0], [1], [0, 0, 1, 1], [], []>} : vector<8x64xbf16>, vector<64x32xbf16>, vector<8x32xf32> -> vector<8x32xf32>
    %cst_3 = arith.constant dense<0.000000e+00> : vector<32xf32>
    %4 = vector.multi_reduction <add>, %3, %cst_3 [0] : vector<8x32xf32> to vector<32xf32>
    %5 = vector.shape_cast %4 : vector<32xf32> to vector<1x32xf32>
    %cst_4 = arith.constant 8.000000e+00 : f32
    %6 = vector.broadcast %cst_4 : f32 to vector<1x32xf32>
    %7 = arith.divf %5, %6 : vector<1x32xf32>
    %8 = arith.mulf %3, %3 : vector<8x32xf32>
    %cst_5 = arith.constant dense<0.000000e+00> : vector<32xf32>
    %9 = vector.multi_reduction <add>, %8, %cst_5 [0] : vector<8x32xf32> to vector<32xf32>
    %10 = vector.shape_cast %9 : vector<32xf32> to vector<1x32xf32>
    %cst_6 = arith.constant 8.000000e+00 : f32
    %11 = vector.broadcast %cst_6 : f32 to vector<1x32xf32>
    %12 = arith.divf %10, %11 : vector<1x32xf32>
    %13 = arith.mulf %7, %7 : vector<1x32xf32>
    %14 = arith.subf %12, %13 : vector<1x32xf32>
    %cst_7 = arith.constant 0.000000e+00 : f32
    %15 = vector.broadcast %cst_7 : f32 to vector<1x32xf32>
    %16 = arith.maximumf %14, %15 : vector<1x32xf32>
    %c0_8 = arith.constant 0 : index
    %c0_9 = arith.constant 0 : index
    %17 = vector.load %arg2[%c0_8, %c0_9] : memref<17x32xf32, #tpu.memory_space<vmem>>, vector<1x32xf32>
    %c8 = arith.constant 8 : index
    %c0_10 = arith.constant 0 : index
    %18 = vector.load %arg2[%c8, %c0_10] : memref<17x32xf32, #tpu.memory_space<vmem>>, vector<1x32xf32>
    %cst_11 = arith.constant 9.99999974E-6 : f32
    %19 = vector.broadcast %cst_11 : f32 to vector<1x32xf32>
    %20 = arith.addf %16, %19 : vector<1x32xf32>
    %21 = math.rsqrt %20 : vector<1x32xf32>
    %22 = arith.mulf %17, %21 : vector<1x32xf32>
    %23 = arith.mulf %7, %22 : vector<1x32xf32>
    %24 = arith.subf %18, %23 : vector<1x32xf32>
    %25 = vector.broadcast %22 : vector<1x32xf32> to vector<8x32xf32>
    %26 = arith.mulf %3, %25 : vector<8x32xf32>
    %27 = vector.broadcast %24 : vector<1x32xf32> to vector<8x32xf32>
    %28 = arith.addf %26, %27 : vector<8x32xf32>
    %cst_12 = arith.constant 0.000000e+00 : f32
    %29 = vector.broadcast %cst_12 : f32 to vector<8x32xf32>
    %30 = arith.maximumf %28, %29 : vector<8x32xf32>
    %31 = arith.truncf %30 : vector<8x32xf32> to vector<8x32xbf16>
    %c64 = arith.constant 64 : index
    %c0_13 = arith.constant 0 : index
    %32 = vector.load %arg1[%c64, %c0_13] : memref<304x32xbf16, #tpu.memory_space<vmem>>, vector<32x32xbf16>
    %cst_14 = arith.constant dense<0.000000e+00> : vector<8x32xf32>
    %33 = tpu.matmul %31, %32, %cst_14 {dimension_numbers = #tpu.dot_dimension_numbers<[1], [0], [0], [1], [0, 0, 1, 1], [], []>} : vector<8x32xbf16>, vector<32x32xbf16>, vector<8x32xf32> -> vector<8x32xf32>
    %cst_15 = arith.constant dense<0.000000e+00> : vector<32xf32>
    %34 = vector.multi_reduction <add>, %33, %cst_15 [0] : vector<8x32xf32> to vector<32xf32>
    %35 = vector.shape_cast %34 : vector<32xf32> to vector<1x32xf32>
    %cst_16 = arith.constant 8.000000e+00 : f32
    %36 = vector.broadcast %cst_16 : f32 to vector<1x32xf32>
    %37 = arith.divf %35, %36 : vector<1x32xf32>
    %38 = arith.mulf %33, %33 : vector<8x32xf32>
    %cst_17 = arith.constant dense<0.000000e+00> : vector<32xf32>
    %39 = vector.multi_reduction <add>, %38, %cst_17 [0] : vector<8x32xf32> to vector<32xf32>
    %40 = vector.shape_cast %39 : vector<32xf32> to vector<1x32xf32>
    %cst_18 = arith.constant 8.000000e+00 : f32
    %41 = vector.broadcast %cst_18 : f32 to vector<1x32xf32>
    %42 = arith.divf %40, %41 : vector<1x32xf32>
    %43 = arith.mulf %37, %37 : vector<1x32xf32>
    %44 = arith.subf %42, %43 : vector<1x32xf32>
    %cst_19 = arith.constant 0.000000e+00 : f32
    %45 = vector.broadcast %cst_19 : f32 to vector<1x32xf32>
    %46 = arith.maximumf %44, %45 : vector<1x32xf32>
    %c1 = arith.constant 1 : index
    %c0_20 = arith.constant 0 : index
    %47 = vector.load %arg2[%c1, %c0_20] : memref<17x32xf32, #tpu.memory_space<vmem>>, vector<1x32xf32>
    %c9 = arith.constant 9 : index
    %c0_21 = arith.constant 0 : index
    %48 = vector.load %arg2[%c9, %c0_21] : memref<17x32xf32, #tpu.memory_space<vmem>>, vector<1x32xf32>
    %cst_22 = arith.constant 9.99999974E-6 : f32
    %49 = vector.broadcast %cst_22 : f32 to vector<1x32xf32>
    %50 = arith.addf %46, %49 : vector<1x32xf32>
    %51 = math.rsqrt %50 : vector<1x32xf32>
    %52 = arith.mulf %47, %51 : vector<1x32xf32>
    %53 = arith.mulf %37, %52 : vector<1x32xf32>
    %54 = arith.subf %48, %53 : vector<1x32xf32>
    %55 = vector.broadcast %52 : vector<1x32xf32> to vector<8x32xf32>
    %56 = arith.mulf %33, %55 : vector<8x32xf32>
    %57 = vector.broadcast %54 : vector<1x32xf32> to vector<8x32xf32>
    %58 = arith.addf %56, %57 : vector<8x32xf32>
    %cst_23 = arith.constant 0.000000e+00 : f32
    %59 = vector.broadcast %cst_23 : f32 to vector<8x32xf32>
    %60 = arith.maximumf %58, %59 : vector<8x32xf32>
    %61 = arith.truncf %60 : vector<8x32xf32> to vector<8x32xbf16>
    %c96 = arith.constant 96 : index
    %c0_24 = arith.constant 0 : index
    %62 = vector.load %arg1[%c96, %c0_24] : memref<304x32xbf16, #tpu.memory_space<vmem>>, vector<32x32xbf16>
    %cst_25 = arith.constant dense<0.000000e+00> : vector<8x32xf32>
    %63 = tpu.matmul %61, %62, %cst_25 {dimension_numbers = #tpu.dot_dimension_numbers<[1], [0], [0], [1], [0, 0, 1, 1], [], []>} : vector<8x32xbf16>, vector<32x32xbf16>, vector<8x32xf32> -> vector<8x32xf32>
    %cst_26 = arith.constant dense<0.000000e+00> : vector<32xf32>
    %64 = vector.multi_reduction <add>, %63, %cst_26 [0] : vector<8x32xf32> to vector<32xf32>
    %65 = vector.shape_cast %64 : vector<32xf32> to vector<1x32xf32>
    %cst_27 = arith.constant 8.000000e+00 : f32
    %66 = vector.broadcast %cst_27 : f32 to vector<1x32xf32>
    %67 = arith.divf %65, %66 : vector<1x32xf32>
    %68 = arith.mulf %63, %63 : vector<8x32xf32>
    %cst_28 = arith.constant dense<0.000000e+00> : vector<32xf32>
    %69 = vector.multi_reduction <add>, %68, %cst_28 [0] : vector<8x32xf32> to vector<32xf32>
    %70 = vector.shape_cast %69 : vector<32xf32> to vector<1x32xf32>
    %cst_29 = arith.constant 8.000000e+00 : f32
    %71 = vector.broadcast %cst_29 : f32 to vector<1x32xf32>
    %72 = arith.divf %70, %71 : vector<1x32xf32>
    %73 = arith.mulf %67, %67 : vector<1x32xf32>
    %74 = arith.subf %72, %73 : vector<1x32xf32>
    %cst_30 = arith.constant 0.000000e+00 : f32
    %75 = vector.broadcast %cst_30 : f32 to vector<1x32xf32>
    %76 = arith.maximumf %74, %75 : vector<1x32xf32>
    %c2 = arith.constant 2 : index
    %c0_31 = arith.constant 0 : index
    %77 = vector.load %arg2[%c2, %c0_31] : memref<17x32xf32, #tpu.memory_space<vmem>>, vector<1x32xf32>
    %c10 = arith.constant 10 : index
    %c0_32 = arith.constant 0 : index
    %78 = vector.load %arg2[%c10, %c0_32] : memref<17x32xf32, #tpu.memory_space<vmem>>, vector<1x32xf32>
    %cst_33 = arith.constant 9.99999974E-6 : f32
    %79 = vector.broadcast %cst_33 : f32 to vector<1x32xf32>
    %80 = arith.addf %76, %79 : vector<1x32xf32>
    %81 = math.rsqrt %80 : vector<1x32xf32>
    %82 = arith.mulf %77, %81 : vector<1x32xf32>
    %83 = arith.mulf %67, %82 : vector<1x32xf32>
    %84 = arith.subf %78, %83 : vector<1x32xf32>
    %85 = vector.broadcast %82 : vector<1x32xf32> to vector<8x32xf32>
    %86 = arith.mulf %63, %85 : vector<8x32xf32>
    %87 = vector.broadcast %84 : vector<1x32xf32> to vector<8x32xf32>
    %88 = arith.addf %86, %87 : vector<8x32xf32>
    %cst_34 = arith.constant 0.000000e+00 : f32
    %89 = vector.broadcast %cst_34 : f32 to vector<8x32xf32>
    %90 = arith.maximumf %88, %89 : vector<8x32xf32>
    %91 = arith.truncf %90 : vector<8x32xf32> to vector<8x32xbf16>
    %c128 = arith.constant 128 : index
    %c0_35 = arith.constant 0 : index
    %92 = vector.load %arg1[%c128, %c0_35] : memref<304x32xbf16, #tpu.memory_space<vmem>>, vector<32x32xbf16>
    %cst_36 = arith.constant dense<0.000000e+00> : vector<8x32xf32>
    %93 = tpu.matmul %91, %92, %cst_36 {dimension_numbers = #tpu.dot_dimension_numbers<[1], [0], [0], [1], [0, 0, 1, 1], [], []>} : vector<8x32xbf16>, vector<32x32xbf16>, vector<8x32xf32> -> vector<8x32xf32>
    %cst_37 = arith.constant dense<0.000000e+00> : vector<32xf32>
    %94 = vector.multi_reduction <add>, %93, %cst_37 [0] : vector<8x32xf32> to vector<32xf32>
    %95 = vector.shape_cast %94 : vector<32xf32> to vector<1x32xf32>
    %cst_38 = arith.constant 8.000000e+00 : f32
    %96 = vector.broadcast %cst_38 : f32 to vector<1x32xf32>
    %97 = arith.divf %95, %96 : vector<1x32xf32>
    %98 = arith.mulf %93, %93 : vector<8x32xf32>
    %cst_39 = arith.constant dense<0.000000e+00> : vector<32xf32>
    %99 = vector.multi_reduction <add>, %98, %cst_39 [0] : vector<8x32xf32> to vector<32xf32>
    %100 = vector.shape_cast %99 : vector<32xf32> to vector<1x32xf32>
    %cst_40 = arith.constant 8.000000e+00 : f32
    %101 = vector.broadcast %cst_40 : f32 to vector<1x32xf32>
    %102 = arith.divf %100, %101 : vector<1x32xf32>
    %103 = arith.mulf %97, %97 : vector<1x32xf32>
    %104 = arith.subf %102, %103 : vector<1x32xf32>
    %cst_41 = arith.constant 0.000000e+00 : f32
    %105 = vector.broadcast %cst_41 : f32 to vector<1x32xf32>
    %106 = arith.maximumf %104, %105 : vector<1x32xf32>
    %c3 = arith.constant 3 : index
    %c0_42 = arith.constant 0 : index
    %107 = vector.load %arg2[%c3, %c0_42] : memref<17x32xf32, #tpu.memory_space<vmem>>, vector<1x32xf32>
    %c11 = arith.constant 11 : index
    %c0_43 = arith.constant 0 : index
    %108 = vector.load %arg2[%c11, %c0_43] : memref<17x32xf32, #tpu.memory_space<vmem>>, vector<1x32xf32>
    %cst_44 = arith.constant 9.99999974E-6 : f32
    %109 = vector.broadcast %cst_44 : f32 to vector<1x32xf32>
    %110 = arith.addf %106, %109 : vector<1x32xf32>
    %111 = math.rsqrt %110 : vector<1x32xf32>
    %112 = arith.mulf %107, %111 : vector<1x32xf32>
    %113 = arith.mulf %97, %112 : vector<1x32xf32>
    %114 = arith.subf %108, %113 : vector<1x32xf32>
    %115 = vector.broadcast %112 : vector<1x32xf32> to vector<8x32xf32>
    %116 = arith.mulf %93, %115 : vector<8x32xf32>
    %117 = vector.broadcast %114 : vector<1x32xf32> to vector<8x32xf32>
    %118 = arith.addf %116, %117 : vector<8x32xf32>
    %cst_45 = arith.constant 0.000000e+00 : f32
    %119 = vector.broadcast %cst_45 : f32 to vector<8x32xf32>
    %120 = arith.maximumf %118, %119 : vector<8x32xf32>
    %121 = arith.truncf %120 : vector<8x32xf32> to vector<8x32xbf16>
    %c160 = arith.constant 160 : index
    %c0_46 = arith.constant 0 : index
    %122 = vector.load %arg1[%c160, %c0_46] : memref<304x32xbf16, #tpu.memory_space<vmem>>, vector<32x32xbf16>
    %cst_47 = arith.constant dense<0.000000e+00> : vector<8x32xf32>
    %123 = tpu.matmul %121, %122, %cst_47 {dimension_numbers = #tpu.dot_dimension_numbers<[1], [0], [0], [1], [0, 0, 1, 1], [], []>} : vector<8x32xbf16>, vector<32x32xbf16>, vector<8x32xf32> -> vector<8x32xf32>
    %cst_48 = arith.constant dense<0.000000e+00> : vector<32xf32>
    %124 = vector.multi_reduction <add>, %123, %cst_48 [0] : vector<8x32xf32> to vector<32xf32>
    %125 = vector.shape_cast %124 : vector<32xf32> to vector<1x32xf32>
    %cst_49 = arith.constant 8.000000e+00 : f32
    %126 = vector.broadcast %cst_49 : f32 to vector<1x32xf32>
    %127 = arith.divf %125, %126 : vector<1x32xf32>
    %128 = arith.mulf %123, %123 : vector<8x32xf32>
    %cst_50 = arith.constant dense<0.000000e+00> : vector<32xf32>
    %129 = vector.multi_reduction <add>, %128, %cst_50 [0] : vector<8x32xf32> to vector<32xf32>
    %130 = vector.shape_cast %129 : vector<32xf32> to vector<1x32xf32>
    %cst_51 = arith.constant 8.000000e+00 : f32
    %131 = vector.broadcast %cst_51 : f32 to vector<1x32xf32>
    %132 = arith.divf %130, %131 : vector<1x32xf32>
    %133 = arith.mulf %127, %127 : vector<1x32xf32>
    %134 = arith.subf %132, %133 : vector<1x32xf32>
    %cst_52 = arith.constant 0.000000e+00 : f32
    %135 = vector.broadcast %cst_52 : f32 to vector<1x32xf32>
    %136 = arith.maximumf %134, %135 : vector<1x32xf32>
    %c4 = arith.constant 4 : index
    %c0_53 = arith.constant 0 : index
    %137 = vector.load %arg2[%c4, %c0_53] : memref<17x32xf32, #tpu.memory_space<vmem>>, vector<1x32xf32>
    %c12 = arith.constant 12 : index
    %c0_54 = arith.constant 0 : index
    %138 = vector.load %arg2[%c12, %c0_54] : memref<17x32xf32, #tpu.memory_space<vmem>>, vector<1x32xf32>
    %cst_55 = arith.constant 9.99999974E-6 : f32
    %139 = vector.broadcast %cst_55 : f32 to vector<1x32xf32>
    %140 = arith.addf %136, %139 : vector<1x32xf32>
    %141 = math.rsqrt %140 : vector<1x32xf32>
    %142 = arith.mulf %137, %141 : vector<1x32xf32>
    %143 = arith.mulf %127, %142 : vector<1x32xf32>
    %144 = arith.subf %138, %143 : vector<1x32xf32>
    %145 = vector.broadcast %142 : vector<1x32xf32> to vector<8x32xf32>
    %146 = arith.mulf %123, %145 : vector<8x32xf32>
    %147 = vector.broadcast %144 : vector<1x32xf32> to vector<8x32xf32>
    %148 = arith.addf %146, %147 : vector<8x32xf32>
    %cst_56 = arith.constant 0.000000e+00 : f32
    %149 = vector.broadcast %cst_56 : f32 to vector<8x32xf32>
    %150 = arith.maximumf %148, %149 : vector<8x32xf32>
    %151 = arith.truncf %150 : vector<8x32xf32> to vector<8x32xbf16>
    %c192 = arith.constant 192 : index
    %c0_57 = arith.constant 0 : index
    %152 = vector.load %arg1[%c192, %c0_57] : memref<304x32xbf16, #tpu.memory_space<vmem>>, vector<32x32xbf16>
    %cst_58 = arith.constant dense<0.000000e+00> : vector<8x32xf32>
    %153 = tpu.matmul %151, %152, %cst_58 {dimension_numbers = #tpu.dot_dimension_numbers<[1], [0], [0], [1], [0, 0, 1, 1], [], []>} : vector<8x32xbf16>, vector<32x32xbf16>, vector<8x32xf32> -> vector<8x32xf32>
    %cst_59 = arith.constant dense<0.000000e+00> : vector<32xf32>
    %154 = vector.multi_reduction <add>, %153, %cst_59 [0] : vector<8x32xf32> to vector<32xf32>
    %155 = vector.shape_cast %154 : vector<32xf32> to vector<1x32xf32>
    %cst_60 = arith.constant 8.000000e+00 : f32
    %156 = vector.broadcast %cst_60 : f32 to vector<1x32xf32>
    %157 = arith.divf %155, %156 : vector<1x32xf32>
    %158 = arith.mulf %153, %153 : vector<8x32xf32>
    %cst_61 = arith.constant dense<0.000000e+00> : vector<32xf32>
    %159 = vector.multi_reduction <add>, %158, %cst_61 [0] : vector<8x32xf32> to vector<32xf32>
    %160 = vector.shape_cast %159 : vector<32xf32> to vector<1x32xf32>
    %cst_62 = arith.constant 8.000000e+00 : f32
    %161 = vector.broadcast %cst_62 : f32 to vector<1x32xf32>
    %162 = arith.divf %160, %161 : vector<1x32xf32>
    %163 = arith.mulf %157, %157 : vector<1x32xf32>
    %164 = arith.subf %162, %163 : vector<1x32xf32>
    %cst_63 = arith.constant 0.000000e+00 : f32
    %165 = vector.broadcast %cst_63 : f32 to vector<1x32xf32>
    %166 = arith.maximumf %164, %165 : vector<1x32xf32>
    %c5 = arith.constant 5 : index
    %c0_64 = arith.constant 0 : index
    %167 = vector.load %arg2[%c5, %c0_64] : memref<17x32xf32, #tpu.memory_space<vmem>>, vector<1x32xf32>
    %c13 = arith.constant 13 : index
    %c0_65 = arith.constant 0 : index
    %168 = vector.load %arg2[%c13, %c0_65] : memref<17x32xf32, #tpu.memory_space<vmem>>, vector<1x32xf32>
    %cst_66 = arith.constant 9.99999974E-6 : f32
    %169 = vector.broadcast %cst_66 : f32 to vector<1x32xf32>
    %170 = arith.addf %166, %169 : vector<1x32xf32>
    %171 = math.rsqrt %170 : vector<1x32xf32>
    %172 = arith.mulf %167, %171 : vector<1x32xf32>
    %173 = arith.mulf %157, %172 : vector<1x32xf32>
    %174 = arith.subf %168, %173 : vector<1x32xf32>
    %175 = vector.broadcast %172 : vector<1x32xf32> to vector<8x32xf32>
    %176 = arith.mulf %153, %175 : vector<8x32xf32>
    %177 = vector.broadcast %174 : vector<1x32xf32> to vector<8x32xf32>
    %178 = arith.addf %176, %177 : vector<8x32xf32>
    %cst_67 = arith.constant 0.000000e+00 : f32
    %179 = vector.broadcast %cst_67 : f32 to vector<8x32xf32>
    %180 = arith.maximumf %178, %179 : vector<8x32xf32>
    %181 = arith.truncf %180 : vector<8x32xf32> to vector<8x32xbf16>
    %c224 = arith.constant 224 : index
    %c0_68 = arith.constant 0 : index
    %182 = vector.load %arg1[%c224, %c0_68] : memref<304x32xbf16, #tpu.memory_space<vmem>>, vector<32x32xbf16>
    %cst_69 = arith.constant dense<0.000000e+00> : vector<8x32xf32>
    %183 = tpu.matmul %181, %182, %cst_69 {dimension_numbers = #tpu.dot_dimension_numbers<[1], [0], [0], [1], [0, 0, 1, 1], [], []>} : vector<8x32xbf16>, vector<32x32xbf16>, vector<8x32xf32> -> vector<8x32xf32>
    %cst_70 = arith.constant dense<0.000000e+00> : vector<32xf32>
    %184 = vector.multi_reduction <add>, %183, %cst_70 [0] : vector<8x32xf32> to vector<32xf32>
    %185 = vector.shape_cast %184 : vector<32xf32> to vector<1x32xf32>
    %cst_71 = arith.constant 8.000000e+00 : f32
    %186 = vector.broadcast %cst_71 : f32 to vector<1x32xf32>
    %187 = arith.divf %185, %186 : vector<1x32xf32>
    %188 = arith.mulf %183, %183 : vector<8x32xf32>
    %cst_72 = arith.constant dense<0.000000e+00> : vector<32xf32>
    %189 = vector.multi_reduction <add>, %188, %cst_72 [0] : vector<8x32xf32> to vector<32xf32>
    %190 = vector.shape_cast %189 : vector<32xf32> to vector<1x32xf32>
    %cst_73 = arith.constant 8.000000e+00 : f32
    %191 = vector.broadcast %cst_73 : f32 to vector<1x32xf32>
    %192 = arith.divf %190, %191 : vector<1x32xf32>
    %193 = arith.mulf %187, %187 : vector<1x32xf32>
    %194 = arith.subf %192, %193 : vector<1x32xf32>
    %cst_74 = arith.constant 0.000000e+00 : f32
    %195 = vector.broadcast %cst_74 : f32 to vector<1x32xf32>
    %196 = arith.maximumf %194, %195 : vector<1x32xf32>
    %c6 = arith.constant 6 : index
    %c0_75 = arith.constant 0 : index
    %197 = vector.load %arg2[%c6, %c0_75] : memref<17x32xf32, #tpu.memory_space<vmem>>, vector<1x32xf32>
    %c14 = arith.constant 14 : index
    %c0_76 = arith.constant 0 : index
    %198 = vector.load %arg2[%c14, %c0_76] : memref<17x32xf32, #tpu.memory_space<vmem>>, vector<1x32xf32>
    %cst_77 = arith.constant 9.99999974E-6 : f32
    %199 = vector.broadcast %cst_77 : f32 to vector<1x32xf32>
    %200 = arith.addf %196, %199 : vector<1x32xf32>
    %201 = math.rsqrt %200 : vector<1x32xf32>
    %202 = arith.mulf %197, %201 : vector<1x32xf32>
    %203 = arith.mulf %187, %202 : vector<1x32xf32>
    %204 = arith.subf %198, %203 : vector<1x32xf32>
    %205 = vector.broadcast %202 : vector<1x32xf32> to vector<8x32xf32>
    %206 = arith.mulf %183, %205 : vector<8x32xf32>
    %207 = vector.broadcast %204 : vector<1x32xf32> to vector<8x32xf32>
    %208 = arith.addf %206, %207 : vector<8x32xf32>
    %cst_78 = arith.constant 0.000000e+00 : f32
    %209 = vector.broadcast %cst_78 : f32 to vector<8x32xf32>
    %210 = arith.maximumf %208, %209 : vector<8x32xf32>
    %211 = arith.truncf %210 : vector<8x32xf32> to vector<8x32xbf16>
    %c256 = arith.constant 256 : index
    %c0_79 = arith.constant 0 : index
    %212 = vector.load %arg1[%c256, %c0_79] : memref<304x32xbf16, #tpu.memory_space<vmem>>, vector<32x32xbf16>
    %cst_80 = arith.constant dense<0.000000e+00> : vector<8x32xf32>
    %213 = tpu.matmul %211, %212, %cst_80 {dimension_numbers = #tpu.dot_dimension_numbers<[1], [0], [0], [1], [0, 0, 1, 1], [], []>} : vector<8x32xbf16>, vector<32x32xbf16>, vector<8x32xf32> -> vector<8x32xf32>
    %cst_81 = arith.constant dense<0.000000e+00> : vector<32xf32>
    %214 = vector.multi_reduction <add>, %213, %cst_81 [0] : vector<8x32xf32> to vector<32xf32>
    %215 = vector.shape_cast %214 : vector<32xf32> to vector<1x32xf32>
    %cst_82 = arith.constant 8.000000e+00 : f32
    %216 = vector.broadcast %cst_82 : f32 to vector<1x32xf32>
    %217 = arith.divf %215, %216 : vector<1x32xf32>
    %218 = arith.mulf %213, %213 : vector<8x32xf32>
    %cst_83 = arith.constant dense<0.000000e+00> : vector<32xf32>
    %219 = vector.multi_reduction <add>, %218, %cst_83 [0] : vector<8x32xf32> to vector<32xf32>
    %220 = vector.shape_cast %219 : vector<32xf32> to vector<1x32xf32>
    %cst_84 = arith.constant 8.000000e+00 : f32
    %221 = vector.broadcast %cst_84 : f32 to vector<1x32xf32>
    %222 = arith.divf %220, %221 : vector<1x32xf32>
    %223 = arith.mulf %217, %217 : vector<1x32xf32>
    %224 = arith.subf %222, %223 : vector<1x32xf32>
    %cst_85 = arith.constant 0.000000e+00 : f32
    %225 = vector.broadcast %cst_85 : f32 to vector<1x32xf32>
    %226 = arith.maximumf %224, %225 : vector<1x32xf32>
    %c7 = arith.constant 7 : index
    %c0_86 = arith.constant 0 : index
    %227 = vector.load %arg2[%c7, %c0_86] : memref<17x32xf32, #tpu.memory_space<vmem>>, vector<1x32xf32>
    %c15 = arith.constant 15 : index
    %c0_87 = arith.constant 0 : index
    %228 = vector.load %arg2[%c15, %c0_87] : memref<17x32xf32, #tpu.memory_space<vmem>>, vector<1x32xf32>
    %cst_88 = arith.constant 9.99999974E-6 : f32
    %229 = vector.broadcast %cst_88 : f32 to vector<1x32xf32>
    %230 = arith.addf %226, %229 : vector<1x32xf32>
    %231 = math.rsqrt %230 : vector<1x32xf32>
    %232 = arith.mulf %227, %231 : vector<1x32xf32>
    %233 = arith.mulf %217, %232 : vector<1x32xf32>
    %234 = arith.subf %228, %233 : vector<1x32xf32>
    %235 = vector.broadcast %232 : vector<1x32xf32> to vector<8x32xf32>
    %236 = arith.mulf %213, %235 : vector<8x32xf32>
    %237 = vector.broadcast %234 : vector<1x32xf32> to vector<8x32xf32>
    %238 = arith.addf %236, %237 : vector<8x32xf32>
    %cst_89 = arith.constant 0.000000e+00 : f32
    %239 = vector.broadcast %cst_89 : f32 to vector<8x32xf32>
    %240 = arith.maximumf %238, %239 : vector<8x32xf32>
    %c288 = arith.constant 288 : index
    %c0_90 = arith.constant 0 : index
    %241 = vector.load %arg1[%c288, %c0_90] : memref<304x32xbf16, #tpu.memory_space<vmem>>, vector<1x32xbf16>
    %242 = arith.extf %241 : vector<1x32xbf16> to vector<1x32xf32>
    %c16 = arith.constant 16 : index
    %c0_91 = arith.constant 0 : index
    %243 = vector.load %arg2[%c16, %c0_91] : memref<17x32xf32, #tpu.memory_space<vmem>>, vector<1x1xf32>
    %244 = vector.broadcast %242 : vector<1x32xf32> to vector<8x32xf32>
    %245 = arith.mulf %240, %244 : vector<8x32xf32>
    %cst_92 = arith.constant dense<0.000000e+00> : vector<8xf32>
    %246 = vector.multi_reduction <add>, %245, %cst_92 [1] : vector<8x32xf32> to vector<8xf32>
    %247 = vector.shape_cast %246 : vector<8xf32> to vector<8x1xf32>
    %248 = vector.broadcast %243 : vector<1x1xf32> to vector<8x1xf32>
    %249 = arith.addf %247, %248 : vector<8x1xf32>
    %c0_93 = arith.constant 0 : index
    %c0_94 = arith.constant 0 : index
    %250 = vector.load %arg3[%c0_93, %c0_94] : memref<8x1xf32, #tpu.memory_space<vmem>>, vector<8x1xf32>
    tpu.vector_store %arg3[%c0_93, %c0_94], %249 {strides = array<i32>} : memref<8x1xf32, #tpu.memory_space<vmem>>, vector<8x1xf32>,
    return
  }
}

</mosaic_0001>

<llo_original>
// kernel: mlp_forward.1
$region0: #{mlp_forward.1}
  #allocation0 [shape = 'u32[]', space=smem, size = 0x4, offset = 0x4, fixed_abs, tag = 'smem constant byte address 0x4 - core index']
  #allocation1 [shape = 'u32[144,128]{1,0:T(1,128)}', space=vmem, size = 0x12000, scoped, tag = 'internal scratch']
  %s0 = inlined_call_operand.vmem [shape: f32[8,64], index: 0, kind: input, shape index: {}]
  %s1 = inlined_call_operand.vmem [shape: bf16[304,32], index: 1, kind: input, shape index: {}]
  %s2 = inlined_call_operand.vmem [shape: f32[17,32], index: 2, kind: input, shape index: {}]
  %s3 = inlined_call_operand.vmem [shape: f32[8,1], index: 3, kind: output, shape index: {}]
  %s4 = sld [smem:[#allocation0]]
  $region22: #{mlp_forward.1} parent=0
    _
  %s6 = ssub.s32 1, %s4
  %s7 = scalar_select 0, %s6, %s4
  // Predicated region
  $region2: #{mlp_forward.1} parent=0 // pred_check
    _
  $region3: #{mlp_forward.1} parent=0 // pred_check_branch
    %9 = sbr.rel (0) target = $region5
  $region4: #{mlp_forward.1} parent=0 // pred_region
    _
  $region5: #{mlp_forward.1} parent=0 // pred_fallthru
    _
  // Predicated region
  $region6: #{mlp_forward.1} parent=0 // pred_check
    _
  $region7: #{mlp_forward.1} parent=0 // pred_check_branch
    %11 = sbr.rel (0) target = $region9
  $region8: #{mlp_forward.1} parent=0 // pred_region
    _
  $region9: #{mlp_forward.1} parent=0 // pred_fallthru
    _
  // Predicated region
  $region10: #{mlp_forward.1} parent=0 // pred_check
    _
  $region11: #{mlp_forward.1} parent=0 // pred_check_branch
    %13 = sbr.rel (0) target = $region13
  $region12: #{mlp_forward.1} parent=0 // pred_region
    _
  $region13: #{mlp_forward.1} parent=0 // pred_fallthru
    _
  %v15 = vld [vmem:[%s0] sm:$0xff]
  %v16 = vpack.c.bf16 %v15, %v15
  %v17 = vld [vmem:[%s1] sm:$0xf]
  %v18 = vld [vmem:[%s1 + $0x4] sm:$0xf]
  %v19 = vld [vmem:[%s1 + $0x8] sm:$0xf]
  %v20 = vld [vmem:[%s1 + $0xc] sm:$0xf]
  %v21 = vld [vmem:[%s1 + $0x10] sm:$0xf]
  %v22 = vld [vmem:[%s1 + $0x14] sm:$0xf]
  %v23 = vld [vmem:[%s1 + $0x18] sm:$0xf]
  %v24 = vld [vmem:[%s1 + $0x1c] sm:$0xf]
  %v33 = vunpack.c.l.b16 %v17
  %v34 = vunpack.c.l.b16 %v18
  %v35 = vunpack.c.l.b16 %v19
  %v36 = vunpack.c.l.b16 %v20
  %v37 = vunpack.c.l.b16 %v21
  %v38 = vunpack.c.l.b16 %v22
  %v39 = vunpack.c.l.b16 %v23
  %v40 = vunpack.c.l.b16 %v24
  %v41 = vpack.c.b16 %v34, %v33
  %v42 = vpack.c.b16 %v36, %v35
  %v43 = vpack.c.b16 %v38, %v37
  %v44 = vpack.c.b16 %v40, %v39
  %vm49 = vcmask 523264
  %v51 = vsel %vm49, %v16, 0
  %53 = vmatprep.subr.bf16.mxu0 0
  %54 = vmatpush1.bf16.msra.mxu0 %v41
  %55 = vmatprep.subr.bf16.mxu0 0
  %56 = vmatpush1.bf16.msra.mxu0 %v42
  %57 = vmatprep.subr.bf16.mxu0 0
  %58 = vmatpush1.bf16.msra.mxu0 %v43
  %59 = vmatprep.subr.bf16.mxu0 0
  %60 = vmatpush1.bf16.msra.mxu0 %v44
  %61 = vmatprep.subr.bf16.mxu0 0
  %62 = vmatpush1.bf16.msra.mxu0 0
  %63 = vmatprep.subr.bf16.mxu0 0
  %64 = vmatpush1.bf16.msra.mxu0 0
  %65 = vmatprep.subr.bf16.mxu0 0
  %66 = vmatpush1.bf16.msra.mxu0 0
  %67 = vmatprep.subr.bf16.mxu0 0
  %68 = vmatpush1.bf16.msra.mxu0 0
  %69 = vmatprep.subr.bf16.mxu0 0
  %70 = vmatpush1.bf16.msra.mxu0 0
  %71 = vmatprep.subr.bf16.mxu0 0
  %72 = vmatpush1.bf16.msra.mxu0 0
  %73 = vmatprep.subr.bf16.mxu0 0
  %74 = vmatpush1.bf16.msra.mxu0 0
  %75 = vmatprep.subr.bf16.mxu0 0
  %76 = vmatpush1.bf16.msra.mxu0 0
  %77 = vmatprep.subr.bf16.mxu0 0
  %78 = vmatpush1.bf16.msra.mxu0 0
  %79 = vmatprep.subr.bf16.mxu0 0
  %80 = vmatpush1.bf16.msra.mxu0 0
  %81 = vmatprep.subr.bf16.mxu0 0
  %82 = vmatpush1.bf16.msra.mxu0 0
  %83 = vmatprep.subr.bf16.mxu0 0
  %84 = vmatpush1.bf16.msra.mxu0 0
  %85 = vmatprep.mubr.bf16.mxu0 0
  %86 = vmatmul.mubr.bf16.gmra.mrb[0].mxu0 %v51
  %v87 = vpop.f32.mrb[0].mxu0
  %v88 = vadd.f32 0.0, %v87
  %v89 = vpop.f32.mrb[0].mxu0
  %v90 = vpop.f32.mrb[0].mxu0
  %v91 = vpop.f32.mrb[0].mxu0
  %92 = vdwg.mxu0
  %vm93 = vcmask 261120
  %v94 = vsel %vm93, %v88, 0.0
  %v95 = vrot.slane %v94, 4
  %v96 = vadd.f32 %v94, %v95
  %v97 = vrot.slane %v96, 2
  %v98 = vadd.f32 %v96, %v97
  %v99 = vrot.slane %v98, 1
  %v100 = vadd.f32 %v98, %v99
  %v101 = vrcp.pop 8.0
  %v102 = vmul.f32 %v100, %v101
  %v103 = vmul.f32 %v88, %v88
  %v104 = vsel %vm93, %v103, 0.0
  %v105 = vrot.slane %v104, 4
  %v106 = vadd.f32 %v104, %v105
  %v107 = vrot.slane %v106, 2
  %v108 = vadd.f32 %v106, %v107
  %v109 = vrot.slane %v108, 1
  %v110 = vadd.f32 %v108, %v109
  %v111 = vmul.f32 %v110, %v101
  %v112 = vmul.f32 %v102, %v102
  %v113 = vsub.f32 %v111, %v112
  %v114 = vmax.f32 %v113, 0.0
  %v115 = vld [vmem:[%s2] sm:$0x1]
  %v116 = vld [vmem:[%s2 + $0x8] sm:$0x1]
  %v117 = vadd.f32 %v114, 1e-05
  %v118 = vrsqrt.pop %v117
  %v119 = vmul.f32 %v115, %v118
  %v120 = vmul.f32 %v102, %v119
  %v121 = vsub.f32 %v116, %v120
  %v122 = vlaneseq
  %v123 = vshrl.u32 %v122, 7
  %v124 = vsub.s32 0, %v123
  %v125 = vrot.slane %v119, %v124
  %v126 = vmul.f32 %v88, %v125
  %v127 = vlaneseq
  %v128 = vshrl.u32 %v127, 7
  %v129 = vsub.s32 0, %v128
  %v130 = vrot.slane %v121, %v129
  %v131 = vadd.f32 %v126, %v130
  %v132 = vmax.f32 %v131, 0.0
  %v133 = vpack.c.bf16 %v132, %v132
  %v134 = vld [vmem:[%s1 + $0x20] sm:$0xf]
  %v135 = vld [vmem:[%s1 + $0x24] sm:$0xf]
  %v136 = vld [vmem:[%s1 + $0x28] sm:$0xf]
  %v137 = vld [vmem:[%s1 + $0x2c] sm:$0xf]
  %v142 = vunpack.c.l.b16 %v134
  %v143 = vunpack.c.l.b16 %v135
  %v144 = vunpack.c.l.b16 %v136
  %v145 = vunpack.c.l.b16 %v137
  %v146 = vpack.c.b16 %v143, %v142
  %v147 = vpack.c.b16 %v145, %v144
  %v151 = vsel %vm93, %v133, 0
  %153 = vmatprep.subr.bf16.mxu0 0
  %154 = vmatpush1.bf16.msra.mxu0 %v146
  %155 = vmatprep.subr.bf16.mxu0 0
  %156 = vmatpush1.bf16.msra.mxu0 %v147
  %157 = vmatprep.subr.bf16.mxu0 0
  %158 = vmatpush1.bf16.msra.mxu0 0
  %159 = vmatprep.subr.bf16.mxu0 0
  %160 = vmatpush1.bf16.msra.mxu0 0
  %161 = vmatprep.subr.bf16.mxu0 0
  %162 = vmatpush1.bf16.msra.mxu0 0
  %163 = vmatprep.subr.bf16.mxu0 0
  %164 = vmatpush1.bf16.msra.mxu0 0
  %165 = vmatprep.subr.bf16.mxu0 0
  %166 = vmatpush1.bf16.msra.mxu0 0
  %167 = vmatprep.subr.bf16.mxu0 0
  %168 = vmatpush1.bf16.msra.mxu0 0
  %169 = vmatprep.subr.bf16.mxu0 0
  %170 = vmatpush1.bf16.msra.mxu0 0
  %171 = vmatprep.subr.bf16.mxu0 0
  %172 = vmatpush1.bf16.msra.mxu0 0
  %173 = vmatprep.subr.bf16.mxu0 0
  %174 = vmatpush1.bf16.msra.mxu0 0
  %175 = vmatprep.subr.bf16.mxu0 0
  %176 = vmatpush1.bf16.msra.mxu0 0
  %177 = vmatprep.subr.bf16.mxu0 0
  %178 = vmatpush1.bf16.msra.mxu0 0
  %179 = vmatprep.subr.bf16.mxu0 0
  %180 = vmatpush1.bf16.msra.mxu0 0
  %181 = vmatprep.subr.bf16.mxu0 0
  %182 = vmatpush1.bf16.msra.mxu0 0
  %183 = vmatprep.subr.bf16.mxu0 0
  %184 = vmatpush1.bf16.msra.mxu0 0
  %185 = vmatprep.mubr.bf16.mxu0 0
  %186 = vmatmul.mubr.bf16.gmra.mrb[0].mxu0 %v151
  %v187 = vpop.f32.mrb[0].mxu0
  %v188 = vadd.f32 0.0, %v187
  %v189 = vpop.f32.mrb[0].mxu0
  %v190 = vpop.f32.mrb[0].mxu0
  %v191 = vpop.f32.mrb[0].mxu0
  %192 = vdwg.mxu0
  %v193 = vsel %vm93, %v188, 0.0
  %v194 = vrot.slane %v193, 4
  %v195 = vadd.f32 %v193, %v194
  %v196 = vrot.slane %v195, 2
  %v197 = vadd.f32 %v195, %v196
  %v198 = vrot.slane %v197, 1
  %v199 = vadd.f32 %v197, %v198
  %v200 = vmul.f32 %v199, %v101
  %v201 = vmul.f32 %v188, %v188
  %v202 = vsel %vm93, %v201, 0.0
  %v203 = vrot.slane %v202, 4
  %v204 = vadd.f32 %v202, %v203
  %v205 = vrot.slane %v204, 2
  %v206 = vadd.f32 %v204, %v205
  %v207 = vrot.slane %v206, 1
  %v208 = vadd.f32 %v206, %v207
  %v209 = vmul.f32 %v208, %v101
  %v210 = vmul.f32 %v200, %v200
  %v211 = vsub.f32 %v209, %v210
  %v212 = vmax.f32 %v211, 0.0
  %v213 = vld [vmem:[%s2 + $0x1] sm:$0x1]
  %v214 = vld [vmem:[%s2 + $0x9] sm:$0x1]
  %v215 = vadd.f32 %v212, 1e-05
  %v216 = vrsqrt.pop %v215
  %v217 = vmul.f32 %v213, %v216
  %v218 = vmul.f32 %v200, %v217
  %v219 = vsub.f32 %v214, %v218
  %v220 = vlaneseq
  %v221 = vshrl.u32 %v220, 7
  %v222 = vsub.s32 0, %v221
  %v223 = vrot.slane %v217, %v222
  %v224 = vmul.f32 %v188, %v223
  %v225 = vlaneseq
  %v226 = vshrl.u32 %v225, 7
  %v227 = vsub.s32 0, %v226
  %v228 = vrot.slane %v219, %v227
  %v229 = vadd.f32 %v224, %v228
  %v230 = vmax.f32 %v229, 0.0
  %v231 = vpack.c.bf16 %v230, %v230
  %v232 = vld [vmem:[%s1 + $0x30] sm:$0xf]
  %v233 = vld [vmem:[%s1 + $0x34] sm:$0xf]
  %v234 = vld [vmem:[%s1 + $0x38] sm:$0xf]
  %v235 = vld [vmem:[%s1 + $0x3c] sm:$0xf]
  %v240 = vunpack.c.l.b16 %v232
  %v241 = vunpack.c.l.b16 %v233
  %v242 = vunpack.c.l.b16 %v234
  %v243 = vunpack.c.l.b16 %v235
  %v244 = vpack.c.b16 %v241, %v240
  %v245 = vpack.c.b16 %v243, %v242
  %v249 = vsel %vm93, %v231, 0
  %251 = vmatprep.subr.bf16.mxu0 0
  %252 = vmatpush1.bf16.msra.mxu0 %v244
  %253 = vmatprep.subr.bf16.mxu0 0
  %254 = vmatpush1.bf16.msra.mxu0 %v245
  %255 = vmatprep.subr.bf16.mxu0 0
  %256 = vmatpush1.bf16.msra.mxu0 0
  %257 = vmatprep.subr.bf16.mxu0 0
  %258 = vmatpush1.bf16.msra.mxu0 0
  %259 = vmatprep.subr.bf16.mxu0 0
  %260 = vmatpush1.bf16.msra.mxu0 0
  %261 = vmatprep.subr.bf16.mxu0 0
  %262 = vmatpush1.bf16.msra.mxu0 0
  %263 = vmatprep.subr.bf16.mxu0 0
  %264 = vmatpush1.bf16.msra.mxu0 0
  %265 = vmatprep.subr.bf16.mxu0 0
  %266 = vmatpush1.bf16.msra.mxu0 0
  %267 = vmatprep.subr.bf16.mxu0 0
  %268 = vmatpush1.bf16.msra.mxu0 0
  %269 = vmatprep.subr.bf16.mxu0 0
  %270 = vmatpush1.bf16.msra.mxu0 0
  %271 = vmatprep.subr.bf16.mxu0 0
  %272 = vmatpush1.bf16.msra.mxu0 0
  %273 = vmatprep.subr.bf16.mxu0 0
  %274 = vmatpush1.bf16.msra.mxu0 0
  %275 = vmatprep.subr.bf16.mxu0 0
  %276 = vmatpush1.bf16.msra.mxu0 0
  %277 = vmatprep.subr.bf16.mxu0 0
  %278 = vmatpush1.bf16.msra.mxu0 0
  %279 = vmatprep.subr.bf16.mxu0 0
  %280 = vmatpush1.bf16.msra.mxu0 0
  %281 = vmatprep.subr.bf16.mxu0 0
  %282 = vmatpush1.bf16.msra.mxu0 0
  %283 = vmatprep.mubr.bf16.mxu0 0
  %284 = vmatmul.mubr.bf16.gmra.mrb[0].mxu0 %v249
  %v285 = vpop.f32.mrb[0].mxu0
  %v286 = vadd.f32 0.0, %v285
  %v287 = vpop.f32.mrb[0].mxu0
  %v288 = vpop.f32.mrb[0].mxu0
  %v289 = vpop.f32.mrb[0].mxu0
  %290 = vdwg.mxu0
  %v291 = vsel %vm93, %v286, 0.0
  %v292 = vrot.slane %v291, 4
  %v293 = vadd.f32 %v291, %v292
  %v294 = vrot.slane %v293, 2
  %v295 = vadd.f32 %v293, %v294
  %v296 = vrot.slane %v295, 1
  %v297 = vadd.f32 %v295, %v296
  %v298 = vmul.f32 %v297, %v101
  %v299 = vmul.f32 %v286, %v286
  %v300 = vsel %vm93, %v299, 0.0
  %v301 = vrot.slane %v300, 4
  %v302 = vadd.f32 %v300, %v301
  %v303 = vrot.slane %v302, 2
  %v304 = vadd.f32 %v302, %v303
  %v305 = vrot.slane %v304, 1
  %v306 = vadd.f32 %v304, %v305
  %v307 = vmul.f32 %v306, %v101
  %v308 = vmul.f32 %v298, %v298
  %v309 = vsub.f32 %v307, %v308
  %v310 = vmax.f32 %v309, 0.0
  %v311 = vld [vmem:[%s2 + $0x2] sm:$0x1]
  %v312 = vld [vmem:[%s2 + $0xa] sm:$0x1]
  %v313 = vadd.f32 %v310, 1e-05
  %v314 = vrsqrt.pop %v313
  %v315 = vmul.f32 %v311, %v314
  %v316 = vmul.f32 %v298, %v315
  %v317 = vsub.f32 %v312, %v316
  %v318 = vlaneseq
  %v319 = vshrl.u32 %v318, 7
  %v320 = vsub.s32 0, %v319
  %v321 = vrot.slane %v315, %v320
  %v322 = vmul.f32 %v286, %v321
  %v323 = vlaneseq
  %v324 = vshrl.u32 %v323, 7
  %v325 = vsub.s32 0, %v324
  %v326 = vrot.slane %v317, %v325
  %v327 = vadd.f32 %v322, %v326
  %v328 = vmax.f32 %v327, 0.0
  %v329 = vpack.c.bf16 %v328, %v328
  %v330 = vld [vmem:[%s1 + $0x40] sm:$0xf]
  %v331 = vld [vmem:[%s1 + $0x44] sm:$0xf]
  %v332 = vld [vmem:[%s1 + $0x48] sm:$0xf]
  %v333 = vld [vmem:[%s1 + $0x4c] sm:$0xf]
  %v338 = vunpack.c.l.b16 %v330
  %v339 = vunpack.c.l.b16 %v331
  %v340 = vunpack.c.l.b16 %v332
  %v341 = vunpack.c.l.b16 %v333
  %v342 = vpack.c.b16 %v339, %v338
  %v343 = vpack.c.b16 %v341, %v340
  %v347 = vsel %vm93, %v329, 0
  %349 = vmatprep.subr.bf16.mxu0 0
  %350 = vmatpush1.bf16.msra.mxu0 %v342
  %351 = vmatprep.subr.bf16.mxu0 0
  %352 = vmatpush1.bf16.msra.mxu0 %v343
  %353 = vmatprep.subr.bf16.mxu0 0
  %354 = vmatpush1.bf16.msra.mxu0 0
  %355 = vmatprep.subr.bf16.mxu0 0
  %356 = vmatpush1.bf16.msra.mxu0 0
  %357 = vmatprep.subr.bf16.mxu0 0
  %358 = vmatpush1.bf16.msra.mxu0 0
  %359 = vmatprep.subr.bf16.mxu0 0
  %360 = vmatpush1.bf16.msra.mxu0 0
  %361 = vmatprep.subr.bf16.mxu0 0
  %362 = vmatpush1.bf16.msra.mxu0 0
  %363 = vmatprep.subr.bf16.mxu0 0
  %364 = vmatpush1.bf16.msra.mxu0 0
  %365 = vmatprep.subr.bf16.mxu0 0
  %366 = vmatpush1.bf16.msra.mxu0 0
  %367 = vmatprep.subr.bf16.mxu0 0
  %368 = vmatpush1.bf16.msra.mxu0 0
  %369 = vmatprep.subr.bf16.mxu0 0
  %370 = vmatpush1.bf16.msra.mxu0 0
  %371 = vmatprep.subr.bf16.mxu0 0
  %372 = vmatpush1.bf16.msra.mxu0 0
  %373 = vmatprep.subr.bf16.mxu0 0
  %374 = vmatpush1.bf16.msra.mxu0 0
  %375 = vmatprep.subr.bf16.mxu0 0
  %376 = vmatpush1.bf16.msra.mxu0 0
  %377 = vmatprep.subr.bf16.mxu0 0
  %378 = vmatpush1.bf16.msra.mxu0 0
  %379 = vmatprep.subr.bf16.mxu0 0
  %380 = vmatpush1.bf16.msra.mxu0 0
  %381 = vmatprep.mubr.bf16.mxu0 0
  %382 = vmatmul.mubr.bf16.gmra.mrb[0].mxu0 %v347
  %v383 = vpop.f32.mrb[0].mxu0
  %v384 = vadd.f32 0.0, %v383
  %v385 = vpop.f32.mrb[0].mxu0
  %v386 = vpop.f32.mrb[0].mxu0
  %v387 = vpop.f32.mrb[0].mxu0
  %388 = vdwg.mxu0
  %v389 = vsel %vm93, %v384, 0.0
  %v390 = vrot.slane %v389, 4
  %v391 = vadd.f32 %v389, %v390
  %v392 = vrot.slane %v391, 2
  %v393 = vadd.f32 %v391, %v392
  %v394 = vrot.slane %v393, 1
  %v395 = vadd.f32 %v393, %v394
  %v396 = vmul.f32 %v395, %v101
  %v397 = vmul.f32 %v384, %v384
  %v398 = vsel %vm93, %v397, 0.0
  %v399 = vrot.slane %v398, 4
  %v400 = vadd.f32 %v398, %v399
  %v401 = vrot.slane %v400, 2
  %v402 = vadd.f32 %v400, %v401
  %v403 = vrot.slane %v402, 1
  %v404 = vadd.f32 %v402, %v403
  %v405 = vmul.f32 %v404, %v101
  %v406 = vmul.f32 %v396, %v396
  %v407 = vsub.f32 %v405, %v406
  %v408 = vmax.f32 %v407, 0.0
  %v409 = vld [vmem:[%s2 + $0x3] sm:$0x1]
  %v410 = vld [vmem:[%s2 + $0xb] sm:$0x1]
  %v411 = vadd.f32 %v408, 1e-05
  %v412 = vrsqrt.pop %v411
  %v413 = vmul.f32 %v409, %v412
  %v414 = vmul.f32 %v396, %v413
  %v415 = vsub.f32 %v410, %v414
  %v416 = vlaneseq
  %v417 = vshrl.u32 %v416, 7
  %v418 = vsub.s32 0, %v417
  %v419 = vrot.slane %v413, %v418
  %v420 = vmul.f32 %v384, %v419
  %v421 = vlaneseq
  %v422 = vshrl.u32 %v421, 7
  %v423 = vsub.s32 0, %v422
  %v424 = vrot.slane %v415, %v423
  %v425 = vadd.f32 %v420, %v424
  %v426 = vmax.f32 %v425, 0.0
  %v427 = vpack.c.bf16 %v426, %v426
  %v428 = vld [vmem:[%s1 + $0x50] sm:$0xf]
  %v429 = vld [vmem:[%s1 + $0x54] sm:$0xf]
  %v430 = vld [vmem:[%s1 + $0x58] sm:$0xf]
  %v431 = vld [vmem:[%s1 + $0x5c] sm:$0xf]
  %v436 = vunpack.c.l.b16 %v428
  %v437 = vunpack.c.l.b16 %v429
  %v438 = vunpack.c.l.b16 %v430
  %v439 = vunpack.c.l.b16 %v431
  %v440 = vpack.c.b16 %v437, %v436
  %v441 = vpack.c.b16 %v439, %v438
  %v445 = vsel %vm93, %v427, 0
  %447 = vmatprep.subr.bf16.mxu0 0
  %448 = vmatpush1.bf16.msra.mxu0 %v440
  %449 = vmatprep.subr.bf16.mxu0 0
  %450 = vmatpush1.bf16.msra.mxu0 %v441
  %451 = vmatprep.subr.bf16.mxu0 0
  %452 = vmatpush1.bf16.msra.mxu0 0
  %453 = vmatprep.subr.bf16.mxu0 0
  %454 = vmatpush1.bf16.msra.mxu0 0
  %455 = vmatprep.subr.bf16.mxu0 0
  %456 = vmatpush1.bf16.msra.mxu0 0
  %457 = vmatprep.subr.bf16.mxu0 0
  %458 = vmatpush1.bf16.msra.mxu0 0
  %459 = vmatprep.subr.bf16.mxu0 0
  %460 = vmatpush1.bf16.msra.mxu0 0
  %461 = vmatprep.subr.bf16.mxu0 0
  %462 = vmatpush1.bf16.msra.mxu0 0
  %463 = vmatprep.subr.bf16.mxu0 0
  %464 = vmatpush1.bf16.msra.mxu0 0
  %465 = vmatprep.subr.bf16.mxu0 0
  %466 = vmatpush1.bf16.msra.mxu0 0
  %467 = vmatprep.subr.bf16.mxu0 0
  %468 = vmatpush1.bf16.msra.mxu0 0
  %469 = vmatprep.subr.bf16.mxu0 0
  %470 = vmatpush1.bf16.msra.mxu0 0
  %471 = vmatprep.subr.bf16.mxu0 0
  %472 = vmatpush1.bf16.msra.mxu0 0
  %473 = vmatprep.subr.bf16.mxu0 0
  %474 = vmatpush1.bf16.msra.mxu0 0
  %475 = vmatprep.subr.bf16.mxu0 0
  %476 = vmatpush1.bf16.msra.mxu0 0
  %477 = vmatprep.subr.bf16.mxu0 0
  %478 = vmatpush1.bf16.msra.mxu0 0
  %479 = vmatprep.mubr.bf16.mxu0 0
  %480 = vmatmul.mubr.bf16.gmra.mrb[0].mxu0 %v445
  %v481 = vpop.f32.mrb[0].mxu0
  %v482 = vadd.f32 0.0, %v481
  %v483 = vpop.f32.mrb[0].mxu0
  %v484 = vpop.f32.mrb[0].mxu0
  %v485 = vpop.f32.mrb[0].mxu0
  %486 = vdwg.mxu0
  %v487 = vsel %vm93, %v482, 0.0
  %v488 = vrot.slane %v487, 4
  %v489 = vadd.f32 %v487, %v488
  %v490 = vrot.slane %v489, 2
  %v491 = vadd.f32 %v489, %v490
  %v492 = vrot.slane %v491, 1
  %v493 = vadd.f32 %v491, %v492
  %v494 = vmul.f32 %v493, %v101
  %v495 = vmul.f32 %v482, %v482
  %v496 = vsel %vm93, %v495, 0.0
  %v497 = vrot.slane %v496, 4
  %v498 = vadd.f32 %v496, %v497
  %v499 = vrot.slane %v498, 2
  %v500 = vadd.f32 %v498, %v499
  %v501 = vrot.slane %v500, 1
  %v502 = vadd.f32 %v500, %v501
  %v503 = vmul.f32 %v502, %v101
  %v504 = vmul.f32 %v494, %v494
  %v505 = vsub.f32 %v503, %v504
  %v506 = vmax.f32 %v505, 0.0
  %v507 = vld [vmem:[%s2 + $0x4] sm:$0x1]
  %v508 = vld [vmem:[%s2 + $0xc] sm:$0x1]
  %v509 = vadd.f32 %v506, 1e-05
  %v510 = vrsqrt.pop %v509
  %v511 = vmul.f32 %v507, %v510
  %v512 = vmul.f32 %v494, %v511
  %v513 = vsub.f32 %v508, %v512
  %v514 = vlaneseq
  %v515 = vshrl.u32 %v514, 7
  %v516 = vsub.s32 0, %v515
  %v517 = vrot.slane %v511, %v516
  %v518 = vmul.f32 %v482, %v517
  %v519 = vlaneseq
  %v520 = vshrl.u32 %v519, 7
  %v521 = vsub.s32 0, %v520
  %v522 = vrot.slane %v513, %v521
  %v523 = vadd.f32 %v518, %v522
  %v524 = vmax.f32 %v523, 0.0
  %v525 = vpack.c.bf16 %v524, %v524
  %v526 = vld [vmem:[%s1 + $0x60] sm:$0xf]
  %v527 = vld [vmem:[%s1 + $0x64] sm:$0xf]
  %v528 = vld [vmem:[%s1 + $0x68] sm:$0xf]
  %v529 = vld [vmem:[%s1 + $0x6c] sm:$0xf]
  %v534 = vunpack.c.l.b16 %v526
  %v535 = vunpack.c.l.b16 %v527
  %v536 = vunpack.c.l.b16 %v528
  %v537 = vunpack.c.l.b16 %v529
  %v538 = vpack.c.b16 %v535, %v534
  %v539 = vpack.c.b16 %v537, %v536
  %v543 = vsel %vm93, %v525, 0
  %545 = vmatprep.subr.bf16.mxu0 0
  %546 = vmatpush1.bf16.msra.mxu0 %v538
  %547 = vmatprep.subr.bf16.mxu0 0
  %548 = vmatpush1.bf16.msra.mxu0 %v539
  %549 = vmatprep.subr.bf16.mxu0 0
  %550 = vmatpush1.bf16.msra.mxu0 0
  %551 = vmatprep.subr.bf16.mxu0 0
  %552 = vmatpush1.bf16.msra.mxu0 0
  %553 = vmatprep.subr.bf16.mxu0 0
  %554 = vmatpush1.bf16.msra.mxu0 0
  %555 = vmatprep.subr.bf16.mxu0 0
  %556 = vmatpush1.bf16.msra.mxu0 0
  %557 = vmatprep.subr.bf16.mxu0 0
  %558 = vmatpush1.bf16.msra.mxu0 0
  %559 = vmatprep.subr.bf16.mxu0 0
  %560 = vmatpush1.bf16.msra.mxu0 0
  %561 = vmatprep.subr.bf16.mxu0 0
  %562 = vmatpush1.bf16.msra.mxu0 0
  %563 = vmatprep.subr.bf16.mxu0 0
  %564 = vmatpush1.bf16.msra.mxu0 0
  %565 = vmatprep.subr.bf16.mxu0 0
  %566 = vmatpush1.bf16.msra.mxu0 0
  %567 = vmatprep.subr.bf16.mxu0 0
  %568 = vmatpush1.bf16.msra.mxu0 0
  %569 = vmatprep.subr.bf16.mxu0 0
  %570 = vmatpush1.bf16.msra.mxu0 0
  %571 = vmatprep.subr.bf16.mxu0 0
  %572 = vmatpush1.bf16.msra.mxu0 0
  %573 = vmatprep.subr.bf16.mxu0 0
  %574 = vmatpush1.bf16.msra.mxu0 0
  %575 = vmatprep.subr.bf16.mxu0 0
  %576 = vmatpush1.bf16.msra.mxu0 0
  %577 = vmatprep.mubr.bf16.mxu0 0
  %578 = vmatmul.mubr.bf16.gmra.mrb[0].mxu0 %v543
  %v579 = vpop.f32.mrb[0].mxu0
  %v580 = vadd.f32 0.0, %v579
  %v581 = vpop.f32.mrb[0].mxu0
  %v582 = vpop.f32.mrb[0].mxu0
  %v583 = vpop.f32.mrb[0].mxu0
  %584 = vdwg.mxu0
  %v585 = vsel %vm93, %v580, 0.0
  %v586 = vrot.slane %v585, 4
  %v587 = vadd.f32 %v585, %v586
  %v588 = vrot.slane %v587, 2
  %v589 = vadd.f32 %v587, %v588
  %v590 = vrot.slane %v589, 1
  %v591 = vadd.f32 %v589, %v590
  %v592 = vmul.f32 %v591, %v101
  %v593 = vmul.f32 %v580, %v580
  %v594 = vsel %vm93, %v593, 0.0
  %v595 = vrot.slane %v594, 4
  %v596 = vadd.f32 %v594, %v595
  %v597 = vrot.slane %v596, 2
  %v598 = vadd.f32 %v596, %v597
  %v599 = vrot.slane %v598, 1
  %v600 = vadd.f32 %v598, %v599
  %v601 = vmul.f32 %v600, %v101
  %v602 = vmul.f32 %v592, %v592
  %v603 = vsub.f32 %v601, %v602
  %v604 = vmax.f32 %v603, 0.0
  %v605 = vld [vmem:[%s2 + $0x5] sm:$0x1]
  %v606 = vld [vmem:[%s2 + $0xd] sm:$0x1]
  %v607 = vadd.f32 %v604, 1e-05
  %v608 = vrsqrt.pop %v607
  %v609 = vmul.f32 %v605, %v608
  %v610 = vmul.f32 %v592, %v609
  %v611 = vsub.f32 %v606, %v610
  %v612 = vlaneseq
  %v613 = vshrl.u32 %v612, 7
  %v614 = vsub.s32 0, %v613
  %v615 = vrot.slane %v609, %v614
  %v616 = vmul.f32 %v580, %v615
  %v617 = vlaneseq
  %v618 = vshrl.u32 %v617, 7
  %v619 = vsub.s32 0, %v618
  %v620 = vrot.slane %v611, %v619
  %v621 = vadd.f32 %v616, %v620
  %v622 = vmax.f32 %v621, 0.0
  %v623 = vpack.c.bf16 %v622, %v622
  %v624 = vld [vmem:[%s1 + $0x70] sm:$0xf]
  %v625 = vld [vmem:[%s1 + $0x74] sm:$0xf]
  %v626 = vld [vmem:[%s1 + $0x78] sm:$0xf]
  %v627 = vld [vmem:[%s1 + $0x7c] sm:$0xf]
  %v632 = vunpack.c.l.b16 %v624
  %v633 = vunpack.c.l.b16 %v625
  %v634 = vunpack.c.l.b16 %v626
  %v635 = vunpack.c.l.b16 %v627
  %v636 = vpack.c.b16 %v633, %v632
  %v637 = vpack.c.b16 %v635, %v634
  %v641 = vsel %vm93, %v623, 0
  %643 = vmatprep.subr.bf16.mxu0 0
  %644 = vmatpush1.bf16.msra.mxu0 %v636
  %645 = vmatprep.subr.bf16.mxu0 0
  %646 = vmatpush1.bf16.msra.mxu0 %v637
  %647 = vmatprep.subr.bf16.mxu0 0
  %648 = vmatpush1.bf16.msra.mxu0 0
  %649 = vmatprep.subr.bf16.mxu0 0
  %650 = vmatpush1.bf16.msra.mxu0 0
  %651 = vmatprep.subr.bf16.mxu0 0
  %652 = vmatpush1.bf16.msra.mxu0 0
  %653 = vmatprep.subr.bf16.mxu0 0
  %654 = vmatpush1.bf16.msra.mxu0 0
  %655 = vmatprep.subr.bf16.mxu0 0
  %656 = vmatpush1.bf16.msra.mxu0 0
  %657 = vmatprep.subr.bf16.mxu0 0
  %658 = vmatpush1.bf16.msra.mxu0 0
  %659 = vmatprep.subr.bf16.mxu0 0
  %660 = vmatpush1.bf16.msra.mxu0 0
  %661 = vmatprep.subr.bf16.mxu0 0
  %662 = vmatpush1.bf16.msra.mxu0 0
  %663 = vmatprep.subr.bf16.mxu0 0
  %664 = vmatpush1.bf16.msra.mxu0 0
  %665 = vmatprep.subr.bf16.mxu0 0
  %666 = vmatpush1.bf16.msra.mxu0 0
  %667 = vmatprep.subr.bf16.mxu0 0
  %668 = vmatpush1.bf16.msra.mxu0 0
  %669 = vmatprep.subr.bf16.mxu0 0
  %670 = vmatpush1.bf16.msra.mxu0 0
  %671 = vmatprep.subr.bf16.mxu0 0
  %672 = vmatpush1.bf16.msra.mxu0 0
  %673 = vmatprep.subr.bf16.mxu0 0
  %674 = vmatpush1.bf16.msra.mxu0 0
  %675 = vmatprep.mubr.bf16.mxu0 0
  %676 = vmatmul.mubr.bf16.gmra.mrb[0].mxu0 %v641
  %v677 = vpop.f32.mrb[0].mxu0
  %v678 = vadd.f32 0.0, %v677
  %v679 = vpop.f32.mrb[0].mxu0
  %v680 = vpop.f32.mrb[0].mxu0
  %v681 = vpop.f32.mrb[0].mxu0
  %682 = vdwg.mxu0
  %v683 = vsel %vm93, %v678, 0.0
  %v684 = vrot.slane %v683, 4
  %v685 = vadd.f32 %v683, %v684
  %v686 = vrot.slane %v685, 2
  %v687 = vadd.f32 %v685, %v686
  %v688 = vrot.slane %v687, 1
  %v689 = vadd.f32 %v687, %v688
  %v690 = vmul.f32 %v689, %v101
  %v691 = vmul.f32 %v678, %v678
  %v692 = vsel %vm93, %v691, 0.0
  %v693 = vrot.slane %v692, 4
  %v694 = vadd.f32 %v692, %v693
  %v695 = vrot.slane %v694, 2
  %v696 = vadd.f32 %v694, %v695
  %v697 = vrot.slane %v696, 1
  %v698 = vadd.f32 %v696, %v697
  %v699 = vmul.f32 %v698, %v101
  %v700 = vmul.f32 %v690, %v690
  %v701 = vsub.f32 %v699, %v700
  %v702 = vmax.f32 %v701, 0.0
  %v703 = vld [vmem:[%s2 + $0x6] sm:$0x1]
  %v704 = vld [vmem:[%s2 + $0xe] sm:$0x1]
  %v705 = vadd.f32 %v702, 1e-05
  %v706 = vrsqrt.pop %v705
  %v707 = vmul.f32 %v703, %v706
  %v708 = vmul.f32 %v690, %v707
  %v709 = vsub.f32 %v704, %v708
  %v710 = vlaneseq
  %v711 = vshrl.u32 %v710, 7
  %v712 = vsub.s32 0, %v711
  %v713 = vrot.slane %v707, %v712
  %v714 = vmul.f32 %v678, %v713
  %v715 = vlaneseq
  %v716 = vshrl.u32 %v715, 7
  %v717 = vsub.s32 0, %v716
  %v718 = vrot.slane %v709, %v717
  %v719 = vadd.f32 %v714, %v718
  %v720 = vmax.f32 %v719, 0.0
  %v721 = vpack.c.bf16 %v720, %v720
  %v722 = vld [vmem:[%s1 + $0x80] sm:$0xf]
  %v723 = vld [vmem:[%s1 + $0x84] sm:$0xf]
  %v724 = vld [vmem:[%s1 + $0x88] sm:$0xf]
  %v725 = vld [vmem:[%s1 + $0x8c] sm:$0xf]
  %v730 = vunpack.c.l.b16 %v722
  %v731 = vunpack.c.l.b16 %v723
  %v732 = vunpack.c.l.b16 %v724
  %v733 = vunpack.c.l.b16 %v725
  %v734 = vpack.c.b16 %v731, %v730
  %v735 = vpack.c.b16 %v733, %v732
  %v739 = vsel %vm93, %v721, 0
  %741 = vmatprep.subr.bf16.mxu0 0
  %742 = vmatpush1.bf16.msra.mxu0 %v734
  %743 = vmatprep.subr.bf16.mxu0 0
  %744 = vmatpush1.bf16.msra.mxu0 %v735
  %745 = vmatprep.subr.bf16.mxu0 0
  %746 = vmatpush1.bf16.msra.mxu0 0
  %747 = vmatprep.subr.bf16.mxu0 0
  %748 = vmatpush1.bf16.msra.mxu0 0
  %749 = vmatprep.subr.bf16.mxu0 0
  %750 = vmatpush1.bf16.msra.mxu0 0
  %751 = vmatprep.subr.bf16.mxu0 0
  %752 = vmatpush1.bf16.msra.mxu0 0
  %753 = vmatprep.subr.bf16.mxu0 0
  %754 = vmatpush1.bf16.msra.mxu0 0
  %755 = vmatprep.subr.bf16.mxu0 0
  %756 = vmatpush1.bf16.msra.mxu0 0
  %757 = vmatprep.subr.bf16.mxu0 0
  %758 = vmatpush1.bf16.msra.mxu0 0
  %759 = vmatprep.subr.bf16.mxu0 0
  %760 = vmatpush1.bf16.msra.mxu0 0
  %761 = vmatprep.subr.bf16.mxu0 0
  %762 = vmatpush1.bf16.msra.mxu0 0
  %763 = vmatprep.subr.bf16.mxu0 0
  %764 = vmatpush1.bf16.msra.mxu0 0
  %765 = vmatprep.subr.bf16.mxu0 0
  %766 = vmatpush1.bf16.msra.mxu0 0
  %767 = vmatprep.subr.bf16.mxu0 0
  %768 = vmatpush1.bf16.msra.mxu0 0
  %769 = vmatprep.subr.bf16.mxu0 0
  %770 = vmatpush1.bf16.msra.mxu0 0
  %771 = vmatprep.subr.bf16.mxu0 0
  %772 = vmatpush1.bf16.msra.mxu0 0
  %773 = vmatprep.mubr.bf16.mxu0 0
  %774 = vmatmul.mubr.bf16.gmra.mrb[0].mxu0 %v739
  %v775 = vpop.f32.mrb[0].mxu0
  %v776 = vadd.f32 0.0, %v775
  %v777 = vpop.f32.mrb[0].mxu0
  %v778 = vpop.f32.mrb[0].mxu0
  %v779 = vpop.f32.mrb[0].mxu0
  %780 = vdwg.mxu0
  %v781 = vsel %vm93, %v776, 0.0
  %v782 = vrot.slane %v781, 4
  %v783 = vadd.f32 %v781, %v782
  %v784 = vrot.slane %v783, 2
  %v785 = vadd.f32 %v783, %v784
  %v786 = vrot.slane %v785, 1
  %v787 = vadd.f32 %v785, %v786
  %v788 = vmul.f32 %v787, %v101
  %v789 = vmul.f32 %v776, %v776
  %v790 = vsel %vm93, %v789, 0.0
  %v791 = vrot.slane %v790, 4
  %v792 = vadd.f32 %v790, %v791
  %v793 = vrot.slane %v792, 2
  %v794 = vadd.f32 %v792, %v793
  %v795 = vrot.slane %v794, 1
  %v796 = vadd.f32 %v794, %v795
  %v797 = vmul.f32 %v796, %v101
  %v798 = vmul.f32 %v788, %v788
  %v799 = vsub.f32 %v797, %v798
  %v800 = vmax.f32 %v799, 0.0
  %v801 = vld [vmem:[%s2 + $0x7] sm:$0x1]
  %v802 = vld [vmem:[%s2 + $0xf] sm:$0x1]
  %v803 = vadd.f32 %v800, 1e-05
  %v804 = vrsqrt.pop %v803
  %v805 = vmul.f32 %v801, %v804
  %v806 = vmul.f32 %v788, %v805
  %v807 = vsub.f32 %v802, %v806
  %v808 = vlaneseq
  %v809 = vshrl.u32 %v808, 7
  %v810 = vsub.s32 0, %v809
  %v811 = vrot.slane %v805, %v810
  %v812 = vmul.f32 %v776, %v811
  %v813 = vlaneseq
  %v814 = vshrl.u32 %v813, 7
  %v815 = vsub.s32 0, %v814
  %v816 = vrot.slane %v807, %v815
  %v817 = vadd.f32 %v812, %v816
  %v818 = vmax.f32 %v817, 0.0
  %v819 = vld [vmem:[%s1 + $0x90] sm:$0x1]
  %v820 = vunpack.c.l.bf16 %v819
  %v821 = vld [vmem:[%s2 + $0x10] sm:$0x1]
  %v822 = vlaneseq
  %v823 = vshrl.u32 %v822, 7
  %v824 = vsub.s32 0, %v823
  %v825 = vrot.slane %v820, %v824
  %v826 = vmul.f32 %v818, %v825
  %v827 = vsel %vm93, %v826, 0.0
  %828 = vadd.xlane.f32.xlu0 %v827
  %v829 = vpop.xlane.xlu0 %828
  %v830 = vlaneseq
  %v831 = vshrl.u32 %v830, 7
  %v832 = vsub.s32 0, %v831
  %v833 = vrot.slane %v821, %v832
  %v834 = vadd.f32 %v829, %v833
  %vm835 = vcmask 7168
  %836 = vst.msk [vmem:[%s3] sm:$0xff] %vm835, %v834
  // Predicated region
  $region14: #{mlp_forward.1} parent=0 // pred_check
    _
  $region15: #{mlp_forward.1} parent=0 // pred_check_branch
    %838 = sbr.rel (0) target = $region17
  $region16: #{mlp_forward.1} parent=0 // pred_region
    _
  $region17: #{mlp_forward.1} parent=0 // pred_fallthru
    _
  // Predicated region
  $region18: #{mlp_forward.1} parent=0 // pred_check
    _
  $region19: #{mlp_forward.1} parent=0 // pred_check_branch
    %840 = sbr.rel (0) target = $region21
  $region20: #{mlp_forward.1} parent=0 // pred_region
    _
  $region21: #{mlp_forward.1} parent=0 // pred_fallthru
    _

</llo_original>
